<compile_context>
chip_gen: v7x
topology: tpu7x:2x2x1
jax: 0.10.0
libtpu: 0.0.40
codegen_flags: <defaults>
</compile_context>

<pallas_src>
import jax
import jax.numpy as jnp
from jax.experimental import pallas as pl
from jax.experimental.pallas import tpu as pltpu


def _round_up(x, m):
    return (x + m - 1) // m * m


# --------------------------------------------------------------------------
# Per-generation configuration (device kind + VMEM budget)
# --------------------------------------------------------------------------
def _device_kind():
    try:
        return jax.devices()[0].device_kind.lower()
    except Exception:
        return ""


_KIND = _device_kind()
# bf16 EUP/VPU activation path exists on v6e and v7x; keep f32 on v5e/older.
_BF16_ACT = any(tag in _KIND for tag in ("v6", "7"))
# v7x has 2 TensorCores per chip -> keep the batch grid >= 2.
_IS_V7X = "7" in _KIND

_MIB = 1024 * 1024
try:
    _VMEM_CAP = int(pltpu.get_tpu_info().vmem_capacity_bytes)
except Exception:
    _VMEM_CAP = 64 * _MIB  # conservative fallback (v7x-sized)
_VMEM_LIMIT = max(32 * _MIB, min(int(_VMEM_CAP * 3 // 4), 100 * _MIB))


# --------------------------------------------------------------------------
# Kernel
# --------------------------------------------------------------------------
def _make_kernel(H, n_split, act_dtype):
    """H = true hidden_dim; gates packed tight as [i|g|o] (width 3*H, padded)."""

    def cell(x_bf16, w, b):
        # MXU in bf16, accumulate f32; activations in act_dtype (bf16 on
        # v6e/v7x, f32 on v5e which has no bf16 VPU/EUP path).
        g = jnp.dot(x_bf16, w, preferred_element_type=jnp.float32) + b
        g = g.astype(act_dtype)
        i_g = jax.nn.sigmoid(g[:, 0:H])          # tight H-stride gate slices
        g_g = jnp.tanh(g[:, H:2 * H])
        o_g = jax.nn.sigmoid(g[:, 2 * H:3 * H])
        return o_g * jnp.tanh(i_g * g_g)         # c0 == 0 -> c1 = i*g

    def kernel(x_ref, w_enc_ref, b_enc_ref, w_dec_ref, b_dec_ref,
               w_out_ref, b_out_ref, o_ref):
        w_enc = w_enc_ref[...]
        b_enc = b_enc_ref[...]
        w_dec = w_dec_ref[...]
        b_dec = b_dec_ref[...]
        w_out = w_out_ref[...]
        b_out = b_out_ref[...]

        bt = x_ref.shape[0]
        sub = bt // n_split
        # Static unroll over sub-tiles -> independent matmul/activation chains
        # in one basic block, letting the scheduler overlap MXU and EUP work.
        for s in range(n_split):
            lo, hi = s * sub, (s + 1) * sub
            x = x_ref[lo:hi, :].astype(jnp.bfloat16)
            h_e = cell(x, w_enc, b_enc)                          # encoder cell
            h_d = cell(h_e.astype(jnp.bfloat16), w_dec, b_dec)   # decoder cell
            out = jnp.dot(h_d.astype(jnp.bfloat16), w_out,
                          preferred_element_type=jnp.float32) + b_out
            o_ref[lo:hi, :] = out.astype(o_ref.dtype)

    return kernel


# --------------------------------------------------------------------------
# One-time host-side parameter preparation (hoisted out of the call path)
# --------------------------------------------------------------------------
def prepare_params(params, input_dim, hidden_dim):
    """Drop the dead f-gate, pack [i|g|o] tightly (width 3*H padded to a
    multiple of 128), cast weights to bf16.  W_hh is unused (h0 == 0)."""
    H = hidden_dim
    G = 3 * H
    Gp = _round_up(G, 128)

    def pack_gates(w_ih, b_ih, b_hh):
        # w_ih: (4H, k_in), PyTorch gate order i, f, g, o.  Drop f (c0 == 0).
        w_t = jnp.asarray(w_ih, jnp.float32).T                    # (k_in, 4H)
        b = jnp.asarray(b_ih, jnp.float32) + jnp.asarray(b_hh, jnp.float32)
        w_p = jnp.concatenate(
            [w_t[:, 0:H], w_t[:, 2 * H:3 * H], w_t[:, 3 * H:4 * H]], axis=1)
        b_p = jnp.concatenate([b[0:H], b[2 * H:3 * H], b[3 * H:4 * H]])
        w_p = jnp.pad(w_p, ((0, 0), (0, Gp - G)))                 # pad once
        b_p = jnp.pad(b_p, (0, Gp - G))[None, :]
        return w_p.astype(jnp.bfloat16), b_p.astype(jnp.float32)

    w_enc, b_enc = pack_gates(params["w_ih_enc"], params["b_ih_enc"],
                              params["b_hh_enc"])
    w_dec, b_dec = pack_gates(params["w_ih_dec"], params["b_ih_dec"],
                              params["b_hh_dec"])
    w_out = jnp.asarray(params["w_out"], jnp.float32).T.astype(jnp.bfloat16)
    b_out = jnp.asarray(params["b_out"], jnp.float32)[None, :]

    return {"w_enc": w_enc, "b_enc": b_enc,
            "w_dec": w_dec, "b_dec": b_dec,
            "w_out": w_out, "b_out": b_out,
            "Gp": Gp}


# --------------------------------------------------------------------------
# Wrapper
# --------------------------------------------------------------------------
def lstm_ae_forward(x, prepped, input_dim, hidden_dim, block_b=1024):
    """x: (B, D) float32 or bfloat16 -> (B, D) float32."""
    B, D = x.shape
    assert D == input_dim
    H = hidden_dim
    Gp = prepped["Gp"]

    w_enc, b_enc = prepped["w_enc"], prepped["b_enc"]
    w_dec, b_dec = prepped["w_dec"], prepped["b_dec"]
    w_out, b_out = prepped["w_out"], prepped["b_out"]

    weight_bytes = 2 * (w_enc.size + w_dec.size + w_out.size)      # bf16
    bias_bytes = 4 * (b_enc.size + b_dec.size + b_out.size)        # f32
    x_itemsize = jnp.dtype(x.dtype).itemsize

    # --- batch tiling: pad at most a few rows, keep tiles big, fit VMEM ---
    Bp8 = _round_up(B, 8)
    num_tiles = pl.cdiv(Bp8, block_b)
    if (_IS_V7X or Bp8 >= 1024) and Bp8 >= 16:
        num_tiles = max(num_tiles, 2)          # keep both v7x TensorCores busy
    while True:
        BT = _round_up(pl.cdiv(Bp8, num_tiles), 8)
        vmem_need = (2 * BT * D * (x_itemsize + 4)      # double-buffered x/out
                     + 2 * (weight_bytes + bias_bytes)  # double-buffered weights
                     + 6 * BT * Gp * 4)                 # in-flight gate temps
        if vmem_need <= int(_VMEM_LIMIT * 0.7) or BT <= 8:
            break
        num_tiles *= 2
    Bp = BT * num_tiles
    x_p = x if Bp == B else jnp.pad(x, ((0, Bp - B), (0, 0)))

    n_split = 2 if (BT >= 16 and BT % 16 == 0) else 1
    act_dtype = jnp.bfloat16 if _BF16_ACT else jnp.float32

    flops = 2 * Bp * (D * Gp + H * Gp + H * D)
    transcendentals = 8 * Bp * H                # 2 layers x (sig, tanh, sig, tanh)
    bytes_accessed = Bp * D * (x_itemsize + 4) + weight_bytes + bias_bytes

    def resident(shape):
        # Full-array block, constant index_map -> weights stay VMEM-resident
        # across the batch grid.  NOTE(v7x, large H): these are still
        # double-buffered by the auto-pipeline; for hidden_dim ~2048 on v7x's
        # 64 MiB VMEM, switch to pl.Buffered(1) / add a grid axis over the
        # gate dimension instead of keeping all weights resident.
        return pl.BlockSpec(shape, lambda i: (0, 0))

    out = pl.pallas_call(
        _make_kernel(H, n_split, act_dtype),
        out_shape=jax.ShapeDtypeStruct((Bp, D), jnp.float32),
        grid=(num_tiles,),
        in_specs=[
            pl.BlockSpec((BT, D), lambda i: (i, 0)),   # x tile (pipelined, unpadded D)
            resident((D, Gp)),                         # w_enc  [i|g|o] tight
            resident((1, Gp)),                         # b_enc
            resident((H, Gp)),                         # w_dec  [i|g|o] tight
            resident((1, Gp)),                         # b_dec
            resident((H, D)),                          # w_out
            resident((1, D)),                          # b_out
        ],
        out_specs=pl.BlockSpec((BT, D), lambda i: (i, 0)),  # unpadded D store
        compiler_params=pltpu.CompilerParams(
            dimension_semantics=("parallel",),               # shards TCs on v7x
            vmem_limit_bytes=_VMEM_LIMIT),
        cost_estimate=pl.CostEstimate(
            flops=flops,
            transcendentals=transcendentals,
            bytes_accessed=bytes_accessed),
    )(x_p, w_enc, b_enc, w_dec, b_dec, w_out, b_out)

    return out if Bp == B else out[:B]


# --------------------------------------------------------------------------
# Parameter init (PyTorch LSTM/Linear shapes) and pure-JAX reference
# --------------------------------------------------------------------------
def init_params(key, input_dim, hidden_dim):
    ks = jax.random.split(key, 8)
    k = 1.0 / jnp.sqrt(hidden_dim)

    def u(kk, shape):
        return jax.random.uniform(kk, shape, jnp.float32, -k, k)

    return {
        "w_ih_enc": u(ks[0], (4 * hidden_dim, input_dim)),
        "b_ih_enc": u(ks[1], (4 * hidden_dim,)),
        "b_hh_enc": u(ks[2], (4 * hidden_dim,)),
        "w_ih_dec": u(ks[3], (4 * hidden_dim, hidden_dim)),
        "b_ih_dec": u(ks[4], (4 * hidden_dim,)),
        "b_hh_dec": u(ks[5], (4 * hidden_dim,)),
        "w_out": u(ks[6], (input_dim, hidden_dim)),
        "b_out": u(ks[7], (input_dim,)),
        # NOTE: W_hh matrices exist in the PyTorch module but never affect this
        # forward pass (h0 == 0, seq_len == 1), so they are omitted.
    }


def lstm_ae_reference(x, params, hidden_dim):
    H = hidden_dim

    def cell(inp, w_ih, b_ih, b_hh):
        gates = inp @ w_ih.T + b_ih + b_hh
        i = jax.nn.sigmoid(gates[:, 0:H])
        g = jnp.tanh(gates[:, 2 * H:3 * H])
        o = jax.nn.sigmoid(gates[:, 3 * H:4 * H])
        return o * jnp.tanh(i * g)

    h_e = cell(x, params["w_ih_enc"], params["b_ih_enc"], params["b_hh_enc"])
    h_d = cell(h_e, params["w_ih_dec"], params["b_ih_dec"], params["b_hh_dec"])
    return h_d @ params["w_out"].T + params["b_out"]


if __name__ == "__main__":
    input_dim = 16
    hidden_dim = 32

    key = jax.random.PRNGKey(0)
    k_x, k_p = jax.random.split(key)
    params = init_params(k_p, input_dim, hidden_dim)
    prepped = prepare_params(params, input_dim, hidden_dim)  # one-time host prep

    ok = True
    for batch in (2, 64):   # small tile (no split) and split/interleaved path
        x = jax.random.normal(jax.random.fold_in(k_x, batch),
                              (batch, input_dim), jnp.float32)
        out = lstm_ae_forward(x, prepped, input_dim, hidden_dim)
        out = jax.block_until_ready(out)
        ref = lstm_ae_reference(x, params, hidden_dim)
        assert out.shape == (batch, input_dim)
        # bf16 MXU operands (+ bf16 activations on v6e/v7x) -> loose tolerance.
        ok = ok and bool(jnp.allclose(out, ref, atol=5e-2, rtol=5e-2))

    assert ok
    print("KERNEL_OK")
</pallas_src>

<mosaic_0001>
module attributes {stable_mosaic.version = 11 : i64} {
  func.func @kernel(%arg0: i32, %arg1: memref<8x16xf32, #tpu.memory_space<vmem>>, %arg2: memref<16x128xbf16, #tpu.memory_space<vmem>>, %arg3: memref<1x128xf32, #tpu.memory_space<vmem>>, %arg4: memref<32x128xbf16, #tpu.memory_space<vmem>>, %arg5: memref<1x128xf32, #tpu.memory_space<vmem>>, %arg6: memref<32x16xbf16, #tpu.memory_space<vmem>>, %arg7: memref<1x16xf32, #tpu.memory_space<vmem>>, %arg8: memref<8x16xf32, #tpu.memory_space<vmem>>) attributes {dimension_semantics = [#tpu.dimension_semantics<parallel>], iteration_bounds = array<i64: 1>, scalar_prefetch = 0 : i64, scratch_operands = 0 : i64, tpu.core_type = #tpu.core_type<tc>, window_params = [{transform_indices = @transform_0, window_bounds = array<i64: 8, 16>}, {pipeline_mode = #tpu.pipeline_mode<synchronous>, transform_indices = @transform_1, window_bounds = array<i64: 16, 128>}, {pipeline_mode = #tpu.pipeline_mode<synchronous>, transform_indices = @transform_2, window_bounds = array<i64: 1, 128>}, {pipeline_mode = #tpu.pipeline_mode<synchronous>, transform_indices = @transform_3, window_bounds = array<i64: 32, 128>}, {pipeline_mode = #tpu.pipeline_mode<synchronous>, transform_indices = @transform_4, window_bounds = array<i64: 1, 128>}, {pipeline_mode = #tpu.pipeline_mode<synchronous>, transform_indices = @transform_5, window_bounds = array<i64: 32, 16>}, {pipeline_mode = #tpu.pipeline_mode<synchronous>, transform_indices = @transform_6, window_bounds = array<i64: 1, 16>}, {transform_indices = @transform_7, window_bounds = array<i64: 8, 16>}]} {
    %c0 = arith.constant 0 : index
    %c0_0 = arith.constant 0 : index
    %0 = vector.load %arg2[%c0, %c0_0] : memref<16x128xbf16, #tpu.memory_space<vmem>>, vector<16x128xbf16>
    %c0_1 = arith.constant 0 : index
    %c0_2 = arith.constant 0 : index
    %1 = vector.load %arg3[%c0_1, %c0_2] : memref<1x128xf32, #tpu.memory_space<vmem>>, vector<1x128xf32>
    %c0_3 = arith.constant 0 : index
    %c0_4 = arith.constant 0 : index
    %2 = vector.load %arg4[%c0_3, %c0_4] : memref<32x128xbf16, #tpu.memory_space<vmem>>, vector<32x128xbf16>
    %c0_5 = arith.constant 0 : index
    %c0_6 = arith.constant 0 : index
    %3 = vector.load %arg5[%c0_5, %c0_6] : memref<1x128xf32, #tpu.memory_space<vmem>>, vector<1x128xf32>
    %c0_7 = arith.constant 0 : index
    %c0_8 = arith.constant 0 : index
    %4 = vector.load %arg6[%c0_7, %c0_8] : memref<32x16xbf16, #tpu.memory_space<vmem>>, vector<32x16xbf16>
    %c0_9 = arith.constant 0 : index
    %c0_10 = arith.constant 0 : index
    %5 = vector.load %arg7[%c0_9, %c0_10] : memref<1x16xf32, #tpu.memory_space<vmem>>, vector<1x16xf32>
    %c0_11 = arith.constant 0 : index
    %c0_12 = arith.constant 0 : index
    %6 = vector.load %arg1[%c0_11, %c0_12] : memref<8x16xf32, #tpu.memory_space<vmem>>, vector<8x16xf32>
    %7 = arith.truncf %6 : vector<8x16xf32> to vector<8x16xbf16>
    %cst = arith.constant dense<0.000000e+00> : vector<8x128xf32>
    %8 = tpu.matmul %7, %0, %cst {dimension_numbers = #tpu.dot_dimension_numbers<[1], [0], [0], [1], [0, 0, 1, 1], [], []>} : vector<8x16xbf16>, vector<16x128xbf16>, vector<8x128xf32> -> vector<8x128xf32>
    %9 = vector.broadcast %1 : vector<1x128xf32> to vector<8x128xf32>
    %10 = arith.addf %8, %9 : vector<8x128xf32>
    %11 = vector.extract_strided_slice %10 {offsets = [0, 0], sizes = [8, 32], strides = [1, 1]} : vector<8x128xf32> to vector<8x32xf32>
    %12 = arith.negf %11 : vector<8x32xf32>
    %13 = math.exp %12 : vector<8x32xf32>
    %cst_13 = arith.constant 1.000000e+00 : f32
    %14 = vector.broadcast %cst_13 : f32 to vector<8x32xf32>
    %15 = arith.addf %14, %13 : vector<8x32xf32>
    %16 = arith.divf %14, %15 : vector<8x32xf32>
    %17 = vector.extract_strided_slice %10 {offsets = [0, 32], sizes = [8, 32], strides = [1, 1]} : vector<8x128xf32> to vector<8x32xf32>
    %18 = math.tanh %17 : vector<8x32xf32>
    %19 = vector.extract_strided_slice %10 {offsets = [0, 64], sizes = [8, 32], strides = [1, 1]} : vector<8x128xf32> to vector<8x32xf32>
    %20 = arith.negf %19 : vector<8x32xf32>
    %21 = math.exp %20 : vector<8x32xf32>
    %cst_14 = arith.constant 1.000000e+00 : f32
    %22 = vector.broadcast %cst_14 : f32 to vector<8x32xf32>
    %23 = arith.addf %22, %21 : vector<8x32xf32>
    %24 = arith.divf %22, %23 : vector<8x32xf32>
    %25 = arith.mulf %16, %18 : vector<8x32xf32>
    %26 = math.tanh %25 : vector<8x32xf32>
    %27 = arith.mulf %24, %26 : vector<8x32xf32>
    %28 = arith.truncf %27 : vector<8x32xf32> to vector<8x32xbf16>
    %cst_15 = arith.constant dense<0.000000e+00> : vector<8x128xf32>
    %29 = tpu.matmul %28, %2, %cst_15 {dimension_numbers = #tpu.dot_dimension_numbers<[1], [0], [0], [1], [0, 0, 1, 1], [], []>} : vector<8x32xbf16>, vector<32x128xbf16>, vector<8x128xf32> -> vector<8x128xf32>
    %30 = vector.broadcast %3 : vector<1x128xf32> to vector<8x128xf32>
    %31 = arith.addf %29, %30 : vector<8x128xf32>
    %32 = vector.extract_strided_slice %31 {offsets = [0, 0], sizes = [8, 32], strides = [1, 1]} : vector<8x128xf32> to vector<8x32xf32>
    %33 = arith.negf %32 : vector<8x32xf32>
    %34 = math.exp %33 : vector<8x32xf32>
    %cst_16 = arith.constant 1.000000e+00 : f32
    %35 = vector.broadcast %cst_16 : f32 to vector<8x32xf32>
    %36 = arith.addf %35, %34 : vector<8x32xf32>
    %37 = arith.divf %35, %36 : vector<8x32xf32>
    %38 = vector.extract_strided_slice %31 {offsets = [0, 32], sizes = [8, 32], strides = [1, 1]} : vector<8x128xf32> to vector<8x32xf32>
    %39 = math.tanh %38 : vector<8x32xf32>
    %40 = vector.extract_strided_slice %31 {offsets = [0, 64], sizes = [8, 32], strides = [1, 1]} : vector<8x128xf32> to vector<8x32xf32>
    %41 = arith.negf %40 : vector<8x32xf32>
    %42 = math.exp %41 : vector<8x32xf32>
    %cst_17 = arith.constant 1.000000e+00 : f32
    %43 = vector.broadcast %cst_17 : f32 to vector<8x32xf32>
    %44 = arith.addf %43, %42 : vector<8x32xf32>
    %45 = arith.divf %43, %44 : vector<8x32xf32>
    %46 = arith.mulf %37, %39 : vector<8x32xf32>
    %47 = math.tanh %46 : vector<8x32xf32>
    %48 = arith.mulf %45, %47 : vector<8x32xf32>
    %49 = arith.truncf %48 : vector<8x32xf32> to vector<8x32xbf16>
    %cst_18 = arith.constant dense<0.000000e+00> : vector<8x16xf32>
    %50 = tpu.matmul %49, %4, %cst_18 {dimension_numbers = #tpu.dot_dimension_numbers<[1], [0], [0], [1], [0, 0, 1, 1], [], []>} : vector<8x32xbf16>, vector<32x16xbf16>, vector<8x16xf32> -> vector<8x16xf32>
    %51 = vector.broadcast %5 : vector<1x16xf32> to vector<8x16xf32>
    %52 = arith.addf %50, %51 : vector<8x16xf32>
    %c0_19 = arith.constant 0 : index
    %c0_20 = arith.constant 0 : index
    %53 = vector.load %arg8[%c0_19, %c0_20] : memref<8x16xf32, #tpu.memory_space<vmem>>, vector<8x16xf32>
    tpu.vector_store %arg8[%c0_19, %c0_20], %52 {strides = array<i32>} : memref<8x16xf32, #tpu.memory_space<vmem>>, vector<8x16xf32>,
    return
  }
  func.func @transform_0(%arg0: i32) -> (i32, i32) {
    %c0_i32 = arith.constant 0 : i32
    %c0_i32_0 = arith.constant 0 : i32
    return %arg0, %c0_i32 : i32, i32
  }
  func.func @transform_1(%arg0: i32) -> (i32, i32) {
    %c0_i32 = arith.constant 0 : i32
    %c0_i32_0 = arith.constant 0 : i32
    %c0_i32_1 = arith.constant 0 : i32
    return %c0_i32, %c0_i32_0 : i32, i32
  }
  func.func @transform_2(%arg0: i32) -> (i32, i32) {
    %c0_i32 = arith.constant 0 : i32
    %c0_i32_0 = arith.constant 0 : i32
    %c0_i32_1 = arith.constant 0 : i32
    return %c0_i32, %c0_i32_0 : i32, i32
  }
  func.func @transform_3(%arg0: i32) -> (i32, i32) {
    %c0_i32 = arith.constant 0 : i32
    %c0_i32_0 = arith.constant 0 : i32
    %c0_i32_1 = arith.constant 0 : i32
    return %c0_i32, %c0_i32_0 : i32, i32
  }
  func.func @transform_4(%arg0: i32) -> (i32, i32) {
    %c0_i32 = arith.constant 0 : i32
    %c0_i32_0 = arith.constant 0 : i32
    %c0_i32_1 = arith.constant 0 : i32
    return %c0_i32, %c0_i32_0 : i32, i32
  }
  func.func @transform_5(%arg0: i32) -> (i32, i32) {
    %c0_i32 = arith.constant 0 : i32
    %c0_i32_0 = arith.constant 0 : i32
    %c0_i32_1 = arith.constant 0 : i32
    return %c0_i32, %c0_i32_0 : i32, i32
  }
  func.func @transform_6(%arg0: i32) -> (i32, i32) {
    %c0_i32 = arith.constant 0 : i32
    %c0_i32_0 = arith.constant 0 : i32
    %c0_i32_1 = arith.constant 0 : i32
    return %c0_i32, %c0_i32_0 : i32, i32
  }
  func.func @transform_7(%arg0: i32) -> (i32, i32) {
    %c0_i32 = arith.constant 0 : i32
    %c0_i32_0 = arith.constant 0 : i32
    return %arg0, %c0_i32 : i32, i32
  }
}

</mosaic_0001>

<llo_original>
// kernel: tpu_custom_call.1
$region0: #{tpu_custom_call.1}
  #allocation0 [shape = 'u32[]', space=smem, size = 0x4, offset = 0x4, fixed_abs, tag = 'smem constant byte address 0x4 - core index']
  #allocation1 [shape = 'u32[144,128]{1,0:T(1,128)}', space=vmem, size = 0x12000, scoped, tag = 'internal scratch']
  %s0 = inlined_call_operand.vmem [shape: f32[8,16], index: 0, kind: input, shape index: {}]
  %s1 = inlined_call_operand.hbm [shape: bf16[16,128], index: 1, kind: input, shape index: {}]
  %s2 = inlined_call_operand.vmem [shape: f32[1,128], index: 2, kind: input, shape index: {}]
  %s3 = inlined_call_operand.vmem [shape: bf16[32,128], index: 3, kind: input, shape index: {}]
  %s4 = inlined_call_operand.vmem [shape: f32[1,128], index: 4, kind: input, shape index: {}]
  %s5 = inlined_call_operand.vmem [shape: bf16[32,16], index: 5, kind: input, shape index: {}]
  %s6 = inlined_call_operand.vmem [shape: f32[1,16], index: 6, kind: input, shape index: {}]
  %s7 = inlined_call_operand.hbm [shape: f32[8,16], index: 7, kind: output, shape index: {}]
  %s8 = sld [smem:[#allocation0]]
  $region42: #{tpu_custom_call.1} parent=0
    _
  %s10 = ssub.s32 1, %s8
  %s11 = scalar_select 0, %s10, %s8
  $region1: #{tpu_custom_call.1} parent=0
    #allocation2 [shape = 'u8[4096]{0}', space=vmem, size = 0x1000, scoped, tag = 'input window, operand 1, single buffered']
    #allocation3 [shape = 's32[1]{0}', space=sflag, size = 0x4, scoped, tag = 'scoped memory for tpu_custom_call.1']
    #allocation4 [shape = 's32[1]{0}', space=sflag, size = 0x4, scoped, tag = 'scoped memory for tpu_custom_call.1']
    #allocation5 [shape = 'u8[4096]{0}', space=vmem, size = 0x1000, scoped, tag = 'output window, operand 0, single buffered']
    %12 = vsyncpa [#allocation3], 0
    %13 = vsyncpa [#allocation4], 0
    // Predicated region
    $region2: #{tpu_custom_call.1} parent=1 // pred_check
      _
    $region3: #{tpu_custom_call.1} parent=1 // pred_check_branch
      %15 = sbr.rel (0) target = $region5
    $region4: #{tpu_custom_call.1} parent=1 // pred_region
      _
    $region5: #{tpu_custom_call.1} parent=1 // pred_fallthru
      _
    // Predicated region
    $region6: #{tpu_custom_call.1} parent=1 // pred_check
      _
    $region7: #{tpu_custom_call.1} parent=1 // pred_check_branch
      %17 = sbr.rel (0) target = $region9
    $region8: #{tpu_custom_call.1} parent=1 // pred_region
      %s19 = ssub.s32 128, 128
      %20 = vsyncadd [#allocation3], %s19
      %s21 = sshll.u32 [#allocation2], 4
      %s22 = int_to_ptr.vmem [resolvable:$true] %s21
      %27 = dma.hbm_to_vmem [thread:$0]  %s1, 128, %s22, [#allocation3], 64, 64, 4
    $region9: #{tpu_custom_call.1} parent=1 // pred_fallthru
      _
    // Predicated region
    $region10: #{tpu_custom_call.1} parent=1 // pred_check
      _
    $region11: #{tpu_custom_call.1} parent=1 // pred_check_branch
      %29 = sbr.rel (0) target = $region13
    $region12: #{tpu_custom_call.1} parent=1 // pred_region
      _
    $region13: #{tpu_custom_call.1} parent=1 // pred_fallthru
      _
    // Predicated region
    $region14: #{tpu_custom_call.1} parent=1 // pred_check
      _
    $region15: #{tpu_custom_call.1} parent=1 // pred_check_branch
      %31 = sbr.rel (0) target = $region17
    $region16: #{tpu_custom_call.1} parent=1 // pred_region
      _
    $region17: #{tpu_custom_call.1} parent=1 // pred_fallthru
      _
    // Predicated region
    $region18: #{tpu_custom_call.1} parent=1 // pred_check
      _
    $region19: #{tpu_custom_call.1} parent=1 // pred_check_branch
      %33 = sbr.rel (0) target = $region21
    $region20: #{tpu_custom_call.1} parent=1 // pred_region
      _
    $region21: #{tpu_custom_call.1} parent=1 // pred_fallthru
      _
    // Predicated region
    $region22: #{tpu_custom_call.1} parent=1 // pred_check
      _
    $region23: #{tpu_custom_call.1} parent=1 // pred_check_branch
      %35 = sbr.rel (0) target = $region25
    $region24: #{tpu_custom_call.1} parent=1 // pred_region
      _
    $region25: #{tpu_custom_call.1} parent=1 // pred_fallthru
      _
    // Predicated region
    $region26: #{tpu_custom_call.1} parent=1 // pred_check
      _
    $region27: #{tpu_custom_call.1} parent=1 // pred_check_branch
      %37 = sbr.rel (0) target = $region29
    $region28: #{tpu_custom_call.1} parent=1 // pred_region
      _
    $region29: #{tpu_custom_call.1} parent=1 // pred_fallthru
      _
    // Predicated region
    $region30: #{tpu_custom_call.1} parent=1 // pred_check
      _
    $region31: #{tpu_custom_call.1} parent=1 // pred_check_branch
      %39 = sbr.rel (0) target = $region33
    $region32: #{tpu_custom_call.1} parent=1 // pred_region
      %40 = dma.done [#allocation3], 128
    $region33: #{tpu_custom_call.1} parent=1 // pred_fallthru
      _
    %v42 = vld [vmem:[#allocation2] sm:$0xf]
    %v43 = vld [vmem:[#allocation2 + $0x4] sm:$0xf]
    %v44 = vld [vmem:[%s2] sm:$0x1]
    %v45 = vld [vmem:[%s3] sm:$0xf]
    %v46 = vld [vmem:[%s3 + $0x4] sm:$0xf]
    %v47 = vld [vmem:[%s3 + $0x8] sm:$0xf]
    %v48 = vld [vmem:[%s3 + $0xc] sm:$0xf]
    %v49 = vld [vmem:[%s4] sm:$0x1]
    %v50 = vld [vmem:[%s5] sm:$0xf]
    %v51 = vld [vmem:[%s5 + $0x4] sm:$0xf]
    %v52 = vld [vmem:[%s5 + $0x8] sm:$0xf]
    %v53 = vld [vmem:[%s5 + $0xc] sm:$0xf]
    %v54 = vld [vmem:[%s6] sm:$0x1]
    %v55 = vld [vmem:[%s0] sm:$0xff]
    %v56 = vpack.c.bf16 %v55, %v55
    %v58 = vlaneseq
    %v59 = vshrl.u32 %v58, 7
    %v60 = vsub.s32 0, %v59
    %v61 = vrot.slane %v44, %v60
    %v65 = vunpack.c.l.b16 %v42
    %v66 = vunpack.c.l.b16 %v43
    %v67 = vpack.c.b16 %v66, %v65
    %vm69 = vcmask 130048
    %v71 = vsel %vm69, %v56, 0
    %73 = vmatprep.subr.bf16.mxu0 0
    %74 = vmatpush1.bf16.msra.mxu0 %v67
    %75 = vmatprep.subr.bf16.mxu0 0
    %76 = vmatpush1.bf16.msra.mxu0 0
    %77 = vmatprep.subr.bf16.mxu0 0
    %78 = vmatpush1.bf16.msra.mxu0 0
    %79 = vmatprep.subr.bf16.mxu0 0
    %80 = vmatpush1.bf16.msra.mxu0 0
    %81 = vmatprep.subr.bf16.mxu0 0
    %82 = vmatpush1.bf16.msra.mxu0 0
    %83 = vmatprep.subr.bf16.mxu0 0
    %84 = vmatpush1.bf16.msra.mxu0 0
    %85 = vmatprep.subr.bf16.mxu0 0
    %86 = vmatpush1.bf16.msra.mxu0 0
    %87 = vmatprep.subr.bf16.mxu0 0
    %88 = vmatpush1.bf16.msra.mxu0 0
    %89 = vmatprep.subr.bf16.mxu0 0
    %90 = vmatpush1.bf16.msra.mxu0 0
    %91 = vmatprep.subr.bf16.mxu0 0
    %92 = vmatpush1.bf16.msra.mxu0 0
    %93 = vmatprep.subr.bf16.mxu0 0
    %94 = vmatpush1.bf16.msra.mxu0 0
    %95 = vmatprep.subr.bf16.mxu0 0
    %96 = vmatpush1.bf16.msra.mxu0 0
    %97 = vmatprep.subr.bf16.mxu0 0
    %98 = vmatpush1.bf16.msra.mxu0 0
    %99 = vmatprep.subr.bf16.mxu0 0
    %100 = vmatpush1.bf16.msra.mxu0 0
    %101 = vmatprep.subr.bf16.mxu0 0
    %102 = vmatpush1.bf16.msra.mxu0 0
    %103 = vmatprep.subr.bf16.mxu0 0
    %104 = vmatpush1.bf16.msra.mxu0 0
    %105 = vmatprep.mubr.bf16.mxu0 0
    %106 = vmatmul.mubr.bf16.gmra.mrb[0].mxu0 %v71
    %v107 = vpop.f32.mrb[0].mxu0
    %v108 = vadd.f32 %v61, %v107
    %v109 = vpop.f32.mrb[0].mxu0
    %v110 = vpop.f32.mrb[0].mxu0
    %v111 = vpop.f32.mrb[0].mxu0
    %112 = vdwg.mxu0
    %v113 = vxor.u32 %v108, 2147483648
    %v114 = vmul.f32 %v113, 1.442695
    %v115 = vpow.pop %v114
    %v116 = vadd.f32 %v115, 1.0
    %v117 = vrcp.pop %v116
    %v118 = vmul.f32 1.0, %v117
    %v119 = vtanh.pop %v108
    %121 = vrot.lane.b32.xlu0 %v119, 96
    %v122 = vpop.permute.xlu0 %121
    %v124 = vmul.f32 %v118, %v122
    %v125 = vtanh.pop %v124
    %127 = vrot.lane.b32.xlu0 %v125, 64
    %v128 = vpop.permute.xlu0 %127
    %v130 = vmul.f32 %v118, %v128
    %v131 = vpack.c.bf16 %v130, %v130
    %v133 = vlaneseq
    %v134 = vshrl.u32 %v133, 7
    %v135 = vsub.s32 0, %v134
    %v136 = vrot.slane %v49, %v135
    %139 = vrot.lane.b32.xlu0 %v131, 64
    %v140 = vpop.permute.xlu0 %139
    %v145 = vunpack.c.l.b16 %v45
    %v146 = vunpack.c.l.b16 %v46
    %v147 = vunpack.c.l.b16 %v47
    %v148 = vunpack.c.l.b16 %v48
    %v149 = vpack.c.b16 %v146, %v145
    %v150 = vpack.c.b16 %v148, %v147
    %vm153 = vcmask 261120
    %v155 = vsel %vm153, %v140, 0
    %157 = vmatprep.subr.bf16.mxu0 0
    %158 = vmatpush1.bf16.msra.mxu0 %v149
    %159 = vmatprep.subr.bf16.mxu0 0
    %160 = vmatpush1.bf16.msra.mxu0 %v150
    %161 = vmatprep.subr.bf16.mxu0 0
    %162 = vmatpush1.bf16.msra.mxu0 0
    %163 = vmatprep.subr.bf16.mxu0 0
    %164 = vmatpush1.bf16.msra.mxu0 0
    %165 = vmatprep.subr.bf16.mxu0 0
    %166 = vmatpush1.bf16.msra.mxu0 0
    %167 = vmatprep.subr.bf16.mxu0 0
    %168 = vmatpush1.bf16.msra.mxu0 0
    %169 = vmatprep.subr.bf16.mxu0 0
    %170 = vmatpush1.bf16.msra.mxu0 0
    %171 = vmatprep.subr.bf16.mxu0 0
    %172 = vmatpush1.bf16.msra.mxu0 0
    %173 = vmatprep.subr.bf16.mxu0 0
    %174 = vmatpush1.bf16.msra.mxu0 0
    %175 = vmatprep.subr.bf16.mxu0 0
    %176 = vmatpush1.bf16.msra.mxu0 0
    %177 = vmatprep.subr.bf16.mxu0 0
    %178 = vmatpush1.bf16.msra.mxu0 0
    %179 = vmatprep.subr.bf16.mxu0 0
    %180 = vmatpush1.bf16.msra.mxu0 0
    %181 = vmatprep.subr.bf16.mxu0 0
    %182 = vmatpush1.bf16.msra.mxu0 0
    %183 = vmatprep.subr.bf16.mxu0 0
    %184 = vmatpush1.bf16.msra.mxu0 0
    %185 = vmatprep.subr.bf16.mxu0 0
    %186 = vmatpush1.bf16.msra.mxu0 0
    %187 = vmatprep.subr.bf16.mxu0 0
    %188 = vmatpush1.bf16.msra.mxu0 0
    %189 = vmatprep.mubr.bf16.mxu0 0
    %190 = vmatmul.mubr.bf16.gmra.mrb[0].mxu0 %v155
    %v191 = vpop.f32.mrb[0].mxu0
    %v192 = vadd.f32 %v136, %v191
    %v193 = vpop.f32.mrb[0].mxu0
    %v194 = vpop.f32.mrb[0].mxu0
    %v195 = vpop.f32.mrb[0].mxu0
    %196 = vdwg.mxu0
    %v197 = vxor.u32 %v192, 2147483648
    %v198 = vmul.f32 %v197, 1.442695
    %v199 = vpow.pop %v198
    %v200 = vadd.f32 %v199, 1.0
    %v201 = vrcp.pop %v200
    %v202 = vmul.f32 1.0, %v201
    %v203 = vtanh.pop %v192
    %205 = vrot.lane.b32.xlu0 %v203, 96
    %v206 = vpop.permute.xlu0 %205
    %v208 = vmul.f32 %v202, %v206
    %v209 = vtanh.pop %v208
    %211 = vrot.lane.b32.xlu0 %v209, 64
    %v212 = vpop.permute.xlu0 %211
    %v214 = vmul.f32 %v202, %v212
    %v215 = vpack.c.bf16 %v214, %v214
    %v217 = vlaneseq
    %v218 = vshrl.u32 %v217, 7
    %v219 = vsub.s32 0, %v218
    %v220 = vrot.slane %v54, %v219
    %223 = vrot.lane.b32.xlu0 %v215, 64
    %v224 = vpop.permute.xlu0 %223
    %v229 = vunpack.c.l.b16 %v50
    %v230 = vunpack.c.l.b16 %v51
    %v231 = vunpack.c.l.b16 %v52
    %v232 = vunpack.c.l.b16 %v53
    %v233 = vpack.c.b16 %v230, %v229
    %v234 = vpack.c.b16 %v232, %v231
    %v238 = vsel %vm153, %v224, 0
    %240 = vmatprep.subr.bf16.mxu0 0
    %241 = vmatpush1.bf16.msra.mxu0 %v233
    %242 = vmatprep.subr.bf16.mxu0 0
    %243 = vmatpush1.bf16.msra.mxu0 %v234
    %244 = vmatprep.subr.bf16.mxu0 0
    %245 = vmatpush1.bf16.msra.mxu0 0
    %246 = vmatprep.subr.bf16.mxu0 0
    %247 = vmatpush1.bf16.msra.mxu0 0
    %248 = vmatprep.subr.bf16.mxu0 0
    %249 = vmatpush1.bf16.msra.mxu0 0
    %250 = vmatprep.subr.bf16.mxu0 0
    %251 = vmatpush1.bf16.msra.mxu0 0
    %252 = vmatprep.subr.bf16.mxu0 0
    %253 = vmatpush1.bf16.msra.mxu0 0
    %254 = vmatprep.subr.bf16.mxu0 0
    %255 = vmatpush1.bf16.msra.mxu0 0
    %256 = vmatprep.subr.bf16.mxu0 0
    %257 = vmatpush1.bf16.msra.mxu0 0
    %258 = vmatprep.subr.bf16.mxu0 0
    %259 = vmatpush1.bf16.msra.mxu0 0
    %260 = vmatprep.subr.bf16.mxu0 0
    %261 = vmatpush1.bf16.msra.mxu0 0
    %262 = vmatprep.subr.bf16.mxu0 0
    %263 = vmatpush1.bf16.msra.mxu0 0
    %264 = vmatprep.subr.bf16.mxu0 0
    %265 = vmatpush1.bf16.msra.mxu0 0
    %266 = vmatprep.subr.bf16.mxu0 0
    %267 = vmatpush1.bf16.msra.mxu0 0
    %268 = vmatprep.subr.bf16.mxu0 0
    %269 = vmatpush1.bf16.msra.mxu0 0
    %270 = vmatprep.subr.bf16.mxu0 0
    %271 = vmatpush1.bf16.msra.mxu0 0
    %272 = vmatprep.mubr.bf16.mxu0 0
    %273 = vmatmul.mubr.bf16.gmra.mrb[0].mxu0 %v238
    %v274 = vpop.f32.mrb[0].mxu0
    %v275 = vadd.f32 %v220, %v274
    %v276 = vpop.f32.mrb[0].mxu0
    %v277 = vpop.f32.mrb[0].mxu0
    %v278 = vpop.f32.mrb[0].mxu0
    %279 = vdwg.mxu0
    %280 = vst.msk [vmem:[#allocation5] sm:$0xff] %vm69, %v275
    // Predicated region
    $region34: #{tpu_custom_call.1} parent=1 // pred_check
      _
    $region35: #{tpu_custom_call.1} parent=1 // pred_check_branch
      %282 = sbr.rel (0) target = $region37
    $region36: #{tpu_custom_call.1} parent=1 // pred_region
      %s284 = ssub.s32 128, 128
      %285 = vsyncadd [#allocation4], %s284
      %s287 = sshll.u32 [#allocation5], 4
      %s288 = int_to_ptr.vmem [resolvable:$true] %s287
      %290 = dma.vmem_to_hbm [thread:$0]  %s288, 128, %s7, [#allocation4]
    $region37: #{tpu_custom_call.1} parent=1 // pred_fallthru
      _
    // Predicated region
    $region38: #{tpu_custom_call.1} parent=1 // pred_check
      _
    $region39: #{tpu_custom_call.1} parent=1 // pred_check_branch
      %292 = sbr.rel (0) target = $region41
    $region40: #{tpu_custom_call.1} parent=1 // pred_region
      %293 = dma.done [#allocation4], 128
    $region41: #{tpu_custom_call.1} parent=1 // pred_fallthru
      _
    %294 = vsyncpa [#allocation3], 1
    %295 = vsyncpa [#allocation4], 1

</llo_original>
